<compile_context>
chip_gen: v7x
topology: tpu7x:2x2x1
jax: 0.10.0
libtpu: 0.0.40
codegen_flags: <defaults>
</compile_context>

<pallas_src>
import jax
import jax.numpy as jnp
from jax.experimental import pallas as pl
from jax.experimental.pallas import tpu as pltpu


def _uncertainty_text_kernel(out_ref, x_ref, w1_ref, w2t_ref,
                             fcw_ref, fcb_ref,
                             logsig_ref, attn_ref):
    bt, L, d_in = x_ref.shape
    d_h = w1_ref.shape[1]

    x = x_ref[...]                                                    # (B_T, L, d_in)

    # --- attention scores: w2(tanh(w1(x))), single head ------------------
    x2 = x.reshape(bt * L, d_in)                                      # big-M MXU matmul
    h = jnp.tanh(jnp.dot(x2, w1_ref[...],
                         preferred_element_type=jnp.float32))         # (B_T*L, d_h)
    h3 = h.reshape(bt, L, d_h)
    # w2 arrives pre-transposed as (1, d_h): elementwise mul + lane reduction
    # avoids an N=1 matmul and any in-kernel transpose.
    scores = jnp.sum(h3 * w2t_ref[...][None, :, :], axis=-1)          # (B_T, L)

    # --- softmax over the sequence dim (lane axis, full vregs) -----------
    m = jnp.max(scores, axis=-1, keepdims=True)                       # (B_T, 1)
    e = jnp.exp(scores - m)
    s = jnp.sum(e, axis=-1, keepdims=True)
    attn = e / s                                                      # (B_T, L)
    attn_ref[...] = attn.astype(attn_ref.dtype)                       # lane-dense store

    # --- residual = attn^T @ x per batch row (broadcast + sublane reduce) -
    residual = jnp.sum(attn[:, :, None] * x, axis=1)                  # (B_T, d_in)

    # --- fused fc(residual) + fc2(out): one matmul over concat features --
    feat = jnp.concatenate([residual, out_ref[...]], axis=-1)         # (B_T, 2*d_in)
    logsig = jnp.dot(feat, fcw_ref[...],
                     preferred_element_type=jnp.float32) + fcb_ref[...]
    logsig_ref[...] = logsig.astype(logsig_ref.dtype)                 # (B_T, d_out)


def _round_up(n, m):
    return ((n + m - 1) // m) * m


def uncertainty_module_text(out, x, params, *, batch_tile=128):
    """out: (B, d_in), x: (B, L, d_in) -> dict(logsigma=(B, d_out), attention=(B, L, 1))."""
    B, L, d_in = x.shape
    d_h = params["w1"].shape[1]
    d_out = params["fc_w"].shape[1]

    # Batch tile: multiple of 8 sublanes, capped at `batch_tile` (128 keeps the
    # VMEM budget comfortable on v7x's 64 MiB even at real PCME d_in/d_out).
    bt = min(batch_tile, _round_up(B, 8))
    bt = max(8, (bt // 8) * 8)
    B_pad = pl.cdiv(B, bt) * bt
    if B_pad != B:
        pad = B_pad - B
        out_p = jnp.pad(out, ((0, pad), (0, 0)))
        x_p = jnp.pad(x, ((0, pad), (0, 0), (0, 0)))
    else:
        out_p, x_p = out, x

    # Layout plumbing in the wrapper (free): fuse fc/fc2 into one weight,
    # pre-sum biases, pre-transpose w2.
    fcw_fused = jnp.concatenate([params["fc_w"], params["fc2_w"]], axis=0)   # (2*d_in, d_out)
    fcb_fused = (params["fc_b"] + params["fc2_b"]).reshape(1, d_out)         # (1, d_out)
    w2t = params["w2"].reshape(1, d_h)                                       # (1, d_h)

    cost = pl.CostEstimate(
        flops=2 * B_pad * (L * d_in * d_h + L * d_h + L * d_in + 2 * d_in * d_out),
        transcendentals=B_pad * L * (d_h + 1),                       # tanh + exp
        bytes_accessed=4 * (int(out_p.size) + int(x_p.size) + d_in * d_h + d_h
                            + 2 * d_in * d_out + d_out
                            + B_pad * d_out + B_pad * L),
    )

    logsigma, attention = pl.pallas_call(
        _uncertainty_text_kernel,
        out_shape=(
            jax.ShapeDtypeStruct((B_pad, d_out), jnp.float32),
            jax.ShapeDtypeStruct((B_pad, L), jnp.float32),           # lane-dense attention
        ),
        grid_spec=pltpu.PrefetchScalarGridSpec(
            num_scalar_prefetch=0,
            grid=(B_pad // bt,),
            in_specs=[
                pl.BlockSpec((bt, d_in), lambda b: (b, 0)),          # out
                pl.BlockSpec((bt, L, d_in), lambda b: (b, 0, 0)),    # x
                pl.BlockSpec((d_in, d_h), lambda b: (0, 0)),         # w1
                pl.BlockSpec((1, d_h), lambda b: (0, 0)),            # w2^T
                pl.BlockSpec((2 * d_in, d_out), lambda b: (0, 0)),   # fused fc|fc2 weight
                pl.BlockSpec((1, d_out), lambda b: (0, 0)),          # fused bias
            ],
            out_specs=[
                pl.BlockSpec((bt, d_out), lambda b: (b, 0)),
                pl.BlockSpec((bt, L), lambda b: (b, 0)),
            ],
        ),
        compiler_params=pltpu.CompilerParams(
            # Batch-tiled grid is embarrassingly parallel -> shards across the
            # two TensorCores on v7x whenever there are >= 2 grid steps.
            dimension_semantics=("parallel",),
        ),
        cost_estimate=cost,
    )(out_p, x_p, params["w1"], w2t, fcw_fused, fcb_fused)

    return {
        "logsigma": logsigma[:B],
        "attention": attention[:B].reshape(B, L, 1),   # match PyTorch (B, L, 1)
    }


def _xavier_uniform(key, fan_in, fan_out):
    limit = jnp.sqrt(6.0 / (fan_in + fan_out))
    return jax.random.uniform(key, (fan_in, fan_out), jnp.float32, -limit, limit)


def init_params(key, d_in, d_out, d_h):
    k1, k2, k3, k4, k5 = jax.random.split(key, 5)
    return {
        # MultiHeadSelfAttention(1, d_in, d_h): w_1 (d_in->d_h), w_2 (d_h->1), bias-free
        "w1": _xavier_uniform(k1, d_in, d_h),
        "w2": _xavier_uniform(k2, d_h, 1),
        # fc: xavier weight, zero bias (init_weights)
        "fc_w": _xavier_uniform(k3, d_in, d_out),
        "fc_b": jnp.zeros((1, d_out), jnp.float32),
        # fc2: default Linear init approximated with deterministic uniform
        "fc2_w": _xavier_uniform(k4, d_in, d_out),
        "fc2_b": jax.random.uniform(k5, (1, d_out), jnp.float32,
                                    -1.0 / jnp.sqrt(d_in), 1.0 / jnp.sqrt(d_in)),
    }


def reference_forward(out, x, p):
    """Pure-JAX reference matching the PyTorch forward (pad_mask=None)."""
    scores = jnp.tanh(x @ p["w1"]) @ p["w2"]                 # (B, L, 1)
    attn = jax.nn.softmax(scores, axis=1)                    # softmax over seq dim
    residual = jnp.einsum("blh,bld->bhd", attn, x)[:, 0, :]  # (B, d_in)
    logsigma = residual @ p["fc_w"] + p["fc_b"] + (out @ p["fc2_w"] + p["fc2_b"])
    return {"logsigma": logsigma, "attention": attn}


if __name__ == "__main__":
    B, L, D_IN, D_H, D_OUT = 2, 8, 32, 32, 16

    key = jax.random.PRNGKey(0)
    k_params, k_out, k_x = jax.random.split(key, 3)
    params = init_params(k_params, D_IN, D_OUT, D_H)

    out_feat = jax.random.normal(k_out, (B, D_IN), jnp.float32)
    x = jax.random.normal(k_x, (B, L, D_IN), jnp.float32)

    result = uncertainty_module_text(out_feat, x, params)
    jax.block_until_ready(result)

    ref = reference_forward(out_feat, x, params)
    assert jnp.allclose(result["logsigma"], ref["logsigma"], atol=1e-4, rtol=1e-4)
    assert jnp.allclose(result["attention"], ref["attention"], atol=1e-5, rtol=1e-4)

    print("KERNEL_OK")
</pallas_src>

<mosaic_0001>
module attributes {stable_mosaic.version = 11 : i64} {
  func.func @_uncertainty_text_kernel(%arg0: i32, %arg1: memref<8x32xf32, #tpu.memory_space<vmem>>, %arg2: memref<8x8x32xf32, #tpu.memory_space<vmem>>, %arg3: memref<32x32xf32, #tpu.memory_space<vmem>>, %arg4: memref<1x32xf32, #tpu.memory_space<vmem>>, %arg5: memref<64x16xf32, #tpu.memory_space<vmem>>, %arg6: memref<1x16xf32, #tpu.memory_space<vmem>>, %arg7: memref<8x16xf32, #tpu.memory_space<vmem>>, %arg8: memref<8x8xf32, #tpu.memory_space<vmem>>) attributes {dimension_semantics = [#tpu.dimension_semantics<parallel>], iteration_bounds = array<i64: 1>, scalar_prefetch = 0 : i64, scratch_operands = 0 : i64, tpu.core_type = #tpu.core_type<tc>, window_params = [{transform_indices = @transform_0, window_bounds = array<i64: 8, 32>}, {transform_indices = @transform_1, window_bounds = array<i64: 8, 8, 32>}, {pipeline_mode = #tpu.pipeline_mode<synchronous>, transform_indices = @transform_2, window_bounds = array<i64: 32, 32>}, {pipeline_mode = #tpu.pipeline_mode<synchronous>, transform_indices = @transform_3, window_bounds = array<i64: 1, 32>}, {pipeline_mode = #tpu.pipeline_mode<synchronous>, transform_indices = @transform_4, window_bounds = array<i64: 64, 16>}, {pipeline_mode = #tpu.pipeline_mode<synchronous>, transform_indices = @transform_5, window_bounds = array<i64: 1, 16>}, {transform_indices = @transform_6, window_bounds = array<i64: 8, 16>}, {transform_indices = @transform_7, window_bounds = array<i64: 8, 8>}]} {
    %c0 = arith.constant 0 : index
    %c0_0 = arith.constant 0 : index
    %c0_1 = arith.constant 0 : index
    %0 = vector.load %arg2[%c0, %c0_0, %c0_1] : memref<8x8x32xf32, #tpu.memory_space<vmem>>, vector<8x8x32xf32>
    %1 = vector.shape_cast %0 : vector<8x8x32xf32> to vector<64x32xf32>
    %c0_2 = arith.constant 0 : index
    %c0_3 = arith.constant 0 : index
    %2 = vector.load %arg3[%c0_2, %c0_3] : memref<32x32xf32, #tpu.memory_space<vmem>>, vector<32x32xf32>
    %cst = arith.constant dense<0.000000e+00> : vector<64x32xf32>
    %3 = tpu.matmul %1, %2, %cst {dimension_numbers = #tpu.dot_dimension_numbers<[1], [0], [0], [1], [0, 0, 1, 1], [], []>} : vector<64x32xf32>, vector<32x32xf32>, vector<64x32xf32> -> vector<64x32xf32>
    %4 = math.tanh %3 : vector<64x32xf32>
    %5 = vector.shape_cast %4 : vector<64x32xf32> to vector<8x8x32xf32>
    %c0_4 = arith.constant 0 : index
    %c0_5 = arith.constant 0 : index
    %6 = vector.load %arg4[%c0_4, %c0_5] : memref<1x32xf32, #tpu.memory_space<vmem>>, vector<1x32xf32>
    %7 = vector.shape_cast %6 : vector<1x32xf32> to vector<1x1x32xf32>
    %8 = vector.broadcast %7 : vector<1x1x32xf32> to vector<8x8x32xf32>
    %9 = arith.mulf %5, %8 : vector<8x8x32xf32>
    %cst_6 = arith.constant dense<0.000000e+00> : vector<8x8xf32>
    %10 = vector.multi_reduction <add>, %9, %cst_6 [2] : vector<8x8x32xf32> to vector<8x8xf32>
    %cst_7 = arith.constant dense<0xFF800000> : vector<8xf32>
    %11 = vector.multi_reduction <maximumf>, %10, %cst_7 [1] : vector<8x8xf32> to vector<8xf32>
    %12 = vector.shape_cast %11 : vector<8xf32> to vector<8x1xf32>
    %13 = vector.broadcast %12 : vector<8x1xf32> to vector<8x8xf32>
    %14 = arith.subf %10, %13 : vector<8x8xf32>
    %15 = math.exp %14 : vector<8x8xf32>
    %cst_8 = arith.constant dense<0.000000e+00> : vector<8xf32>
    %16 = vector.multi_reduction <add>, %15, %cst_8 [1] : vector<8x8xf32> to vector<8xf32>
    %17 = vector.shape_cast %16 : vector<8xf32> to vector<8x1xf32>
    %18 = vector.broadcast %17 : vector<8x1xf32> to vector<8x8xf32>
    %19 = arith.divf %15, %18 : vector<8x8xf32>
    %c0_9 = arith.constant 0 : index
    %c0_10 = arith.constant 0 : index
    %20 = vector.load %arg8[%c0_9, %c0_10] : memref<8x8xf32, #tpu.memory_space<vmem>>, vector<8x8xf32>
    tpu.vector_store %arg8[%c0_9, %c0_10], %19 {strides = array<i32>} : memref<8x8xf32, #tpu.memory_space<vmem>>, vector<8x8xf32>,
    %21 = vector.shape_cast %19 : vector<8x8xf32> to vector<8x8x1xf32>
    %22 = vector.broadcast %21 : vector<8x8x1xf32> to vector<8x8x32xf32>
    %23 = arith.mulf %22, %0 : vector<8x8x32xf32>
    %cst_11 = arith.constant dense<0.000000e+00> : vector<8x32xf32>
    %24 = vector.multi_reduction <add>, %23, %cst_11 [1] : vector<8x8x32xf32> to vector<8x32xf32>
    %c0_12 = arith.constant 0 : index
    %c0_13 = arith.constant 0 : index
    %25 = vector.load %arg1[%c0_12, %c0_13] : memref<8x32xf32, #tpu.memory_space<vmem>>, vector<8x32xf32>
    %26 = tpu.concatenate %24, %25 in 1 : vector<8x32xf32>, vector<8x32xf32> -> vector<8x64xf32>
    %c0_14 = arith.constant 0 : index
    %c0_15 = arith.constant 0 : index
    %27 = vector.load %arg5[%c0_14, %c0_15] : memref<64x16xf32, #tpu.memory_space<vmem>>, vector<64x16xf32>
    %cst_16 = arith.constant dense<0.000000e+00> : vector<8x16xf32>
    %28 = tpu.matmul %26, %27, %cst_16 {dimension_numbers = #tpu.dot_dimension_numbers<[1], [0], [0], [1], [0, 0, 1, 1], [], []>} : vector<8x64xf32>, vector<64x16xf32>, vector<8x16xf32> -> vector<8x16xf32>
    %c0_17 = arith.constant 0 : index
    %c0_18 = arith.constant 0 : index
    %29 = vector.load %arg6[%c0_17, %c0_18] : memref<1x16xf32, #tpu.memory_space<vmem>>, vector<1x16xf32>
    %30 = vector.broadcast %29 : vector<1x16xf32> to vector<8x16xf32>
    %31 = arith.addf %28, %30 : vector<8x16xf32>
    %c0_19 = arith.constant 0 : index
    %c0_20 = arith.constant 0 : index
    %32 = vector.load %arg7[%c0_19, %c0_20] : memref<8x16xf32, #tpu.memory_space<vmem>>, vector<8x16xf32>
    tpu.vector_store %arg7[%c0_19, %c0_20], %31 {strides = array<i32>} : memref<8x16xf32, #tpu.memory_space<vmem>>, vector<8x16xf32>,
    return
  }
  func.func @transform_0(%arg0: i32) -> (i32, i32) {
    %c0_i32 = arith.constant 0 : i32
    %c0_i32_0 = arith.constant 0 : i32
    return %arg0, %c0_i32 : i32, i32
  }
  func.func @transform_1(%arg0: i32) -> (i32, i32, i32) {
    %c0_i32 = arith.constant 0 : i32
    %c0_i32_0 = arith.constant 0 : i32
    %c0_i32_1 = arith.constant 0 : i32
    return %arg0, %c0_i32, %c0_i32_0 : i32, i32, i32
  }
  func.func @transform_2(%arg0: i32) -> (i32, i32) {
    %c0_i32 = arith.constant 0 : i32
    %c0_i32_0 = arith.constant 0 : i32
    %c0_i32_1 = arith.constant 0 : i32
    return %c0_i32, %c0_i32_0 : i32, i32
  }
  func.func @transform_3(%arg0: i32) -> (i32, i32) {
    %c0_i32 = arith.constant 0 : i32
    %c0_i32_0 = arith.constant 0 : i32
    %c0_i32_1 = arith.constant 0 : i32
    return %c0_i32, %c0_i32_0 : i32, i32
  }
  func.func @transform_4(%arg0: i32) -> (i32, i32) {
    %c0_i32 = arith.constant 0 : i32
    %c0_i32_0 = arith.constant 0 : i32
    %c0_i32_1 = arith.constant 0 : i32
    return %c0_i32, %c0_i32_0 : i32, i32
  }
  func.func @transform_5(%arg0: i32) -> (i32, i32) {
    %c0_i32 = arith.constant 0 : i32
    %c0_i32_0 = arith.constant 0 : i32
    %c0_i32_1 = arith.constant 0 : i32
    return %c0_i32, %c0_i32_0 : i32, i32
  }
  func.func @transform_6(%arg0: i32) -> (i32, i32) {
    %c0_i32 = arith.constant 0 : i32
    %c0_i32_0 = arith.constant 0 : i32
    return %arg0, %c0_i32 : i32, i32
  }
  func.func @transform_7(%arg0: i32) -> (i32, i32) {
    %c0_i32 = arith.constant 0 : i32
    %c0_i32_0 = arith.constant 0 : i32
    return %arg0, %c0_i32 : i32, i32
  }
}

</mosaic_0001>

<llo_original>
// kernel: tpu_custom_call.1
$region0: #{tpu_custom_call.1}
  #allocation0 [shape = 'u32[]', space=smem, size = 0x4, offset = 0x4, fixed_abs, tag = 'smem constant byte address 0x4 - core index']
  #allocation1 [shape = 'u32[144,128]{1,0:T(1,128)}', space=vmem, size = 0x12000, scoped, tag = 'internal scratch']
  %s0 = inlined_call_operand.vmem [shape: f32[8,32], index: 0, kind: input, shape index: {}]
  %s1 = inlined_call_operand.vmem [shape: f32[8,8,32], index: 1, kind: input, shape index: {}]
  %s2 = inlined_call_operand.hbm [shape: f32[32,32], index: 2, kind: input, shape index: {}]
  %s3 = inlined_call_operand.vmem [shape: f32[1,32], index: 3, kind: input, shape index: {}]
  %s4 = inlined_call_operand.vmem [shape: f32[64,16], index: 4, kind: input, shape index: {}]
  %s5 = inlined_call_operand.vmem [shape: f32[1,16], index: 5, kind: input, shape index: {}]
  %s6 = inlined_call_operand.hbm [shape: f32[8,16], index: 6, kind: output, shape index: {0}]
  %s7 = inlined_call_operand.hbm [shape: f32[8,8], index: 7, kind: output, shape index: {1}]
  %8 = xla_tuple %s6, %s7
  %s9 = sld [smem:[#allocation0]]
  $region46: #{tpu_custom_call.1} parent=0
    _
  %s11 = ssub.s32 1, %s9
  %s12 = scalar_select 0, %s11, %s9
  $region1: #{tpu_custom_call.1} parent=0
    #allocation2 [shape = 'u8[16384]{0}', space=vmem, size = 0x4000, scoped, tag = 'input window, operand 2, single buffered']
    #allocation3 [shape = 's32[1]{0}', space=sflag, size = 0x4, scoped, tag = 'scoped memory for tpu_custom_call.1']
    #allocation4 [shape = 's32[1]{0}', space=sflag, size = 0x4, scoped, tag = 'scoped memory for tpu_custom_call.1']
    #allocation5 [shape = 'u8[4096]{0}', space=vmem, size = 0x1000, scoped, tag = 'output window, operand 0, single buffered']
    #allocation6 [shape = 'u8[4096]{0}', space=vmem, size = 0x1000, scoped, tag = 'output window, operand 1, single buffered']
    #allocation7 [shape = 's32[1]{0}', space=sflag, size = 0x4, scoped, tag = 'scoped memory for tpu_custom_call.1']
    %13 = vsyncpa [#allocation3], 0
    %14 = vsyncpa [#allocation4], 0
    %15 = vsyncpa [#allocation7], 0
    // Predicated region
    $region2: #{tpu_custom_call.1} parent=1 // pred_check
      _
    $region3: #{tpu_custom_call.1} parent=1 // pred_check_branch
      %17 = sbr.rel (0) target = $region5
    $region4: #{tpu_custom_call.1} parent=1 // pred_region
      _
    $region5: #{tpu_custom_call.1} parent=1 // pred_fallthru
      _
    // Predicated region
    $region6: #{tpu_custom_call.1} parent=1 // pred_check
      _
    $region7: #{tpu_custom_call.1} parent=1 // pred_check_branch
      %19 = sbr.rel (0) target = $region9
    $region8: #{tpu_custom_call.1} parent=1 // pred_region
      _
    $region9: #{tpu_custom_call.1} parent=1 // pred_fallthru
      _
    // Predicated region
    $region10: #{tpu_custom_call.1} parent=1 // pred_check
      _
    $region11: #{tpu_custom_call.1} parent=1 // pred_check_branch
      %21 = sbr.rel (0) target = $region13
    $region12: #{tpu_custom_call.1} parent=1 // pred_region
      %s23 = ssub.s32 512, 512
      %24 = vsyncadd [#allocation3], %s23
      %s25 = sshll.u32 [#allocation2], 4
      %s26 = int_to_ptr.vmem [resolvable:$true] %s25
      %31 = dma.hbm_to_vmem [thread:$0]  %s2, 512, %s26, [#allocation3], 128, 128, 8
    $region13: #{tpu_custom_call.1} parent=1 // pred_fallthru
      _
    // Predicated region
    $region14: #{tpu_custom_call.1} parent=1 // pred_check
      _
    $region15: #{tpu_custom_call.1} parent=1 // pred_check_branch
      %33 = sbr.rel (0) target = $region17
    $region16: #{tpu_custom_call.1} parent=1 // pred_region
      _
    $region17: #{tpu_custom_call.1} parent=1 // pred_fallthru
      _
    // Predicated region
    $region18: #{tpu_custom_call.1} parent=1 // pred_check
      _
    $region19: #{tpu_custom_call.1} parent=1 // pred_check_branch
      %35 = sbr.rel (0) target = $region21
    $region20: #{tpu_custom_call.1} parent=1 // pred_region
      _
    $region21: #{tpu_custom_call.1} parent=1 // pred_fallthru
      _
    // Predicated region
    $region22: #{tpu_custom_call.1} parent=1 // pred_check
      _
    $region23: #{tpu_custom_call.1} parent=1 // pred_check_branch
      %37 = sbr.rel (0) target = $region25
    $region24: #{tpu_custom_call.1} parent=1 // pred_region
      _
    $region25: #{tpu_custom_call.1} parent=1 // pred_fallthru
      _
    // Predicated region
    $region26: #{tpu_custom_call.1} parent=1 // pred_check
      _
    $region27: #{tpu_custom_call.1} parent=1 // pred_check_branch
      %39 = sbr.rel (0) target = $region29
    $region28: #{tpu_custom_call.1} parent=1 // pred_region
      %40 = dma.done [#allocation3], 512
    $region29: #{tpu_custom_call.1} parent=1 // pred_fallthru
      _
    %v41 = vld [vmem:[%s1] sm:$0xff]
    %v42 = vld [vmem:[%s1 + $0x8] sm:$0xff]
    %v43 = vld [vmem:[%s1 + $0x10] sm:$0xff]
    %v44 = vld [vmem:[%s1 + $0x18] sm:$0xff]
    %v45 = vld [vmem:[%s1 + $0x20] sm:$0xff]
    %v46 = vld [vmem:[%s1 + $0x28] sm:$0xff]
    %v47 = vld [vmem:[%s1 + $0x30] sm:$0xff]
    %v48 = vld [vmem:[%s1 + $0x38] sm:$0xff]
    %v49 = vld [vmem:[#allocation2] sm:$0xff]
    %v50 = vld [vmem:[#allocation2 + $0x8] sm:$0xff]
    %v51 = vld [vmem:[#allocation2 + $0x10] sm:$0xff]
    %v52 = vld [vmem:[#allocation2 + $0x18] sm:$0xff]
    %vm53 = vcmask 261120
    %v55 = vsel %vm53, %v41, 0
    %v58 = vsel %vm53, %v42, 0
    %v61 = vsel %vm53, %v43, 0
    %v64 = vsel %vm53, %v44, 0
    %v67 = vsel %vm53, %v45, 0
    %v70 = vsel %vm53, %v46, 0
    %v73 = vsel %vm53, %v47, 0
    %v76 = vsel %vm53, %v48, 0
    %78 = vmatprep.subr.mxu0 0.0
    %79 = vmatpush1.msra.mxu0 %v49
    %80 = vmatprep.subr.mxu0 0.0
    %81 = vmatpush1.msra.mxu0 %v50
    %82 = vmatprep.subr.mxu0 0.0
    %83 = vmatpush1.msra.mxu0 %v51
    %84 = vmatprep.subr.mxu0 0.0
    %85 = vmatpush1.msra.mxu0 %v52
    %86 = vmatprep.subr.mxu0 0.0
    %87 = vmatpush1.msra.mxu0 0.0
    %88 = vmatprep.subr.mxu0 0.0
    %89 = vmatpush1.msra.mxu0 0.0
    %90 = vmatprep.subr.mxu0 0.0
    %91 = vmatpush1.msra.mxu0 0.0
    %92 = vmatprep.subr.mxu0 0.0
    %93 = vmatpush1.msra.mxu0 0.0
    %94 = vmatprep.subr.mxu0 0.0
    %95 = vmatpush1.msra.mxu0 0.0
    %96 = vmatprep.subr.mxu0 0.0
    %97 = vmatpush1.msra.mxu0 0.0
    %98 = vmatprep.subr.mxu0 0.0
    %99 = vmatpush1.msra.mxu0 0.0
    %100 = vmatprep.subr.mxu0 0.0
    %101 = vmatpush1.msra.mxu0 0.0
    %102 = vmatprep.subr.mxu0 0.0
    %103 = vmatpush1.msra.mxu0 0.0
    %104 = vmatprep.subr.mxu0 0.0
    %105 = vmatpush1.msra.mxu0 0.0
    %106 = vmatprep.subr.mxu0 0.0
    %107 = vmatpush1.msra.mxu0 0.0
    %108 = vmatprep.subr.mxu0 0.0
    %109 = vmatpush1.msra.mxu0 0.0
    %110 = vmatprep.subr.mxu0 0.0
    %111 = vmatpush1.msra.mxu0 0.0
    %112 = vmatprep.subr.mxu0 0.0
    %113 = vmatpush1.msra.mxu0 0.0
    %114 = vmatprep.subr.mxu0 0.0
    %115 = vmatpush1.msra.mxu0 0.0
    %116 = vmatprep.subr.mxu0 0.0
    %117 = vmatpush1.msra.mxu0 0.0
    %118 = vmatprep.subr.mxu0 0.0
    %119 = vmatpush1.msra.mxu0 0.0
    %120 = vmatprep.subr.mxu0 0.0
    %121 = vmatpush1.msra.mxu0 0.0
    %122 = vmatprep.subr.mxu0 0.0
    %123 = vmatpush1.msra.mxu0 0.0
    %124 = vmatprep.subr.mxu0 0.0
    %125 = vmatpush1.msra.mxu0 0.0
    %126 = vmatprep.subr.mxu0 0.0
    %127 = vmatpush1.msra.mxu0 0.0
    %128 = vmatprep.subr.mxu0 0.0
    %129 = vmatpush1.msra.mxu0 0.0
    %130 = vmatprep.subr.mxu0 0.0
    %131 = vmatpush1.msra.mxu0 0.0
    %132 = vmatprep.subr.mxu0 0.0
    %133 = vmatpush1.msra.mxu0 0.0
    %134 = vmatprep.subr.mxu0 0.0
    %135 = vmatpush1.msra.mxu0 0.0
    %136 = vmatprep.subr.mxu0 0.0
    %137 = vmatpush1.msra.mxu0 0.0
    %138 = vmatprep.subr.mxu0 0.0
    %139 = vmatpush1.msra.mxu0 0.0
    %140 = vmatprep.subr.mxu0 0.0
    %141 = vmatpush1.msra.mxu0 0.0
    %142 = vmatprep.mubr.f32.mxu0 0.0
    %143 = vmatmul.mubr.f32.gmra.mrb[0].mxu0 %v55
    %v144 = vpop.f32.mrb[0].mxu0
    %v145 = vadd.f32 0.0, %v144
    %v146 = vpop.f32.mrb[0].mxu0
    %147 = vmatprep.mubr.f32.mxu0 0.0
    %148 = vmatmul.mubr.f32.gmra.mrb[0].mxu0 %v58
    %v149 = vpop.f32.mrb[0].mxu0
    %v150 = vadd.f32 0.0, %v149
    %v151 = vpop.f32.mrb[0].mxu0
    %152 = vmatprep.mubr.f32.mxu0 0.0
    %153 = vmatmul.mubr.f32.gmra.mrb[0].mxu0 %v61
    %v154 = vpop.f32.mrb[0].mxu0
    %v155 = vadd.f32 0.0, %v154
    %v156 = vpop.f32.mrb[0].mxu0
    %157 = vmatprep.mubr.f32.mxu0 0.0
    %158 = vmatmul.mubr.f32.gmra.mrb[0].mxu0 %v64
    %v159 = vpop.f32.mrb[0].mxu0
    %v160 = vadd.f32 0.0, %v159
    %v161 = vpop.f32.mrb[0].mxu0
    %162 = vmatprep.mubr.f32.mxu0 0.0
    %163 = vmatmul.mubr.f32.gmra.mrb[0].mxu0 %v67
    %v164 = vpop.f32.mrb[0].mxu0
    %v165 = vadd.f32 0.0, %v164
    %v166 = vpop.f32.mrb[0].mxu0
    %167 = vmatprep.mubr.f32.mxu0 0.0
    %168 = vmatmul.mubr.f32.gmra.mrb[0].mxu0 %v70
    %v169 = vpop.f32.mrb[0].mxu0
    %v170 = vadd.f32 0.0, %v169
    %v171 = vpop.f32.mrb[0].mxu0
    %172 = vmatprep.mubr.f32.mxu0 0.0
    %173 = vmatmul.mubr.f32.gmra.mrb[0].mxu0 %v73
    %v174 = vpop.f32.mrb[0].mxu0
    %v175 = vadd.f32 0.0, %v174
    %v176 = vpop.f32.mrb[0].mxu0
    %177 = vmatprep.mubr.f32.mxu0 0.0
    %178 = vmatmul.mubr.f32.gmra.mrb[0].mxu0 %v76
    %v179 = vpop.f32.mrb[0].mxu0
    %v180 = vadd.f32 0.0, %v179
    %v181 = vpop.f32.mrb[0].mxu0
    %182 = vdwg.mxu0
    %v183 = vtanh.pop %v145
    %v184 = vtanh.pop %v150
    %v185 = vtanh.pop %v155
    %v186 = vtanh.pop %v160
    %v187 = vtanh.pop %v165
    %v188 = vtanh.pop %v170
    %v189 = vtanh.pop %v175
    %v190 = vtanh.pop %v180
    %v191 = vld [vmem:[%s3] sm:$0x1]
    %v193 = vlaneseq
    %v194 = vshrl.u32 %v193, 7
    %v195 = vsub.s32 0, %v194
    %v196 = vrot.slane %v191, %v195
    %v198 = vmul.f32 %v183, %v196
    %v199 = vmul.f32 %v184, %v196
    %v200 = vmul.f32 %v185, %v196
    %v201 = vmul.f32 %v186, %v196
    %v202 = vmul.f32 %v187, %v196
    %v203 = vmul.f32 %v188, %v196
    %v204 = vmul.f32 %v189, %v196
    %v205 = vmul.f32 %v190, %v196
    %v206 = vsel %vm53, %v198, 0.0
    %207 = vadd.xlane.f32.xlu0 %v206
    %v208 = vpop.xlane.xlu0 %207
    %v209 = vsel %vm53, %v199, 0.0
    %210 = vadd.xlane.f32.xlu0 %v209
    %v211 = vpop.xlane.xlu0 %210
    %v212 = vsel %vm53, %v200, 0.0
    %213 = vadd.xlane.f32.xlu0 %v212
    %v214 = vpop.xlane.xlu0 %213
    %v215 = vsel %vm53, %v201, 0.0
    %216 = vadd.xlane.f32.xlu0 %v215
    %v217 = vpop.xlane.xlu0 %216
    %v218 = vsel %vm53, %v202, 0.0
    %219 = vadd.xlane.f32.xlu0 %v218
    %v220 = vpop.xlane.xlu0 %219
    %v221 = vsel %vm53, %v203, 0.0
    %222 = vadd.xlane.f32.xlu0 %v221
    %v223 = vpop.xlane.xlu0 %222
    %v224 = vsel %vm53, %v204, 0.0
    %225 = vadd.xlane.f32.xlu0 %v224
    %v226 = vpop.xlane.xlu0 %225
    %v227 = vsel %vm53, %v205, 0.0
    %228 = vadd.xlane.f32.xlu0 %v227
    %v229 = vpop.xlane.xlu0 %228
    %v238 = vlaneseq
    %v239 = vand.u32 %v238, 127
    %v240 = vlaneseq
    %v241 = vshrl.u32 %v240, 7
    %v242 = vsub.s32 %v239, %v241
    %v243 = vrot.slane %v208, %v242
    %v244 = vlaneseq
    %v245 = vshrl.u32 %v244, 7
    %v246 = vsub.s32 %v239, %v245
    %v247 = vrot.slane %v211, %v246
    %v248 = vlaneseq
    %v249 = vshrl.u32 %v248, 7
    %v250 = vsub.s32 %v239, %v249
    %v251 = vrot.slane %v214, %v250
    %v252 = vlaneseq
    %v253 = vshrl.u32 %v252, 7
    %v254 = vsub.s32 %v239, %v253
    %v255 = vrot.slane %v217, %v254
    %v256 = vlaneseq
    %v257 = vshrl.u32 %v256, 7
    %v258 = vsub.s32 %v239, %v257
    %v259 = vrot.slane %v220, %v258
    %v260 = vlaneseq
    %v261 = vshrl.u32 %v260, 7
    %v262 = vsub.s32 %v239, %v261
    %v263 = vrot.slane %v223, %v262
    %v264 = vlaneseq
    %v265 = vshrl.u32 %v264, 7
    %v266 = vsub.s32 %v239, %v265
    %v267 = vrot.slane %v226, %v266
    %v268 = vlaneseq
    %v269 = vshrl.u32 %v268, 7
    %v270 = vsub.s32 %v239, %v269
    %v271 = vrot.slane %v229, %v270
    %vm272 = vcmask 1041409
    %v273 = vsel %vm272, %v247, %v243
    %vm274 = vcmask 1042434
    %v275 = vsel %vm274, %v251, %v273
    %vm276 = vcmask 1043459
    %v277 = vsel %vm276, %v255, %v275
    %vm278 = vcmask 1044484
    %v279 = vsel %vm278, %v259, %v277
    %vm280 = vcmask 1045509
    %v281 = vsel %vm280, %v263, %v279
    %vm282 = vcmask 1046534
    %v283 = vsel %vm282, %v267, %v281
    %vm284 = vcmask 1047559
    %v285 = vsel %vm284, %v271, %v283
    %vm287 = vcmask 64512
    %v288 = vsel %vm287, %v285, -inf
    %289 = vmax.xlane.f32.xlu0 %v288
    %v290 = vpop.xlane.xlu0 %289
    %v292 = vlaneseq
    %v293 = vshrl.u32 %v292, 7
    %v294 = vsub.s32 0, %v293
    %v295 = vrot.slane %v290, %v294
    %v296 = vlaneseq
    %v297 = vshrl.u32 %v296, 7
    %v298 = vsub.s32 1, %v297
    %v299 = vrot.slane %v290, %v298
    %v300 = vlaneseq
    %v301 = vshrl.u32 %v300, 7
    %v302 = vsub.s32 2, %v301
    %v303 = vrot.slane %v290, %v302
    %v304 = vlaneseq
    %v305 = vshrl.u32 %v304, 7
    %v306 = vsub.s32 3, %v305
    %v307 = vrot.slane %v290, %v306
    %v308 = vlaneseq
    %v309 = vshrl.u32 %v308, 7
    %v310 = vsub.s32 4, %v309
    %v311 = vrot.slane %v290, %v310
    %v312 = vlaneseq
    %v313 = vshrl.u32 %v312, 7
    %v314 = vsub.s32 5, %v313
    %v315 = vrot.slane %v290, %v314
    %v316 = vlaneseq
    %v317 = vshrl.u32 %v316, 7
    %v318 = vsub.s32 6, %v317
    %v319 = vrot.slane %v290, %v318
    %v320 = vlaneseq
    %v321 = vshrl.u32 %v320, 7
    %v322 = vsub.s32 7, %v321
    %v323 = vrot.slane %v290, %v322
    %v332 = vsub.f32 %v208, %v295
    %v333 = vsub.f32 %v211, %v299
    %v334 = vsub.f32 %v214, %v303
    %v335 = vsub.f32 %v217, %v307
    %v336 = vsub.f32 %v220, %v311
    %v337 = vsub.f32 %v223, %v315
    %v338 = vsub.f32 %v226, %v319
    %v339 = vsub.f32 %v229, %v323
    %v340 = vmul.f32 %v332, 1.442695
    %v341 = vpow.pop %v340
    %v342 = vmul.f32 %v333, 1.442695
    %v343 = vpow.pop %v342
    %v344 = vmul.f32 %v334, 1.442695
    %v345 = vpow.pop %v344
    %v346 = vmul.f32 %v335, 1.442695
    %v347 = vpow.pop %v346
    %v348 = vmul.f32 %v336, 1.442695
    %v349 = vpow.pop %v348
    %v350 = vmul.f32 %v337, 1.442695
    %v351 = vpow.pop %v350
    %v352 = vmul.f32 %v338, 1.442695
    %v353 = vpow.pop %v352
    %v354 = vmul.f32 %v339, 1.442695
    %v355 = vpow.pop %v354
    %364 = vset.pattern.permute.xlu0 0
    %365 = vperm.xlu0 %364, %v341
    %v366 = vpop.permute.xlu0 %365
    %367 = vset.pattern.permute.xlu0 0
    %368 = vperm.xlu0 %367, %v343
    %v369 = vpop.permute.xlu0 %368
    %370 = vset.pattern.permute.xlu0 0
    %371 = vperm.xlu0 %370, %v345
    %v372 = vpop.permute.xlu0 %371
    %373 = vset.pattern.permute.xlu0 0
    %374 = vperm.xlu0 %373, %v347
    %v375 = vpop.permute.xlu0 %374
    %376 = vset.pattern.permute.xlu0 0
    %377 = vperm.xlu0 %376, %v349
    %v378 = vpop.permute.xlu0 %377
    %379 = vset.pattern.permute.xlu0 0
    %380 = vperm.xlu0 %379, %v351
    %v381 = vpop.permute.xlu0 %380
    %382 = vset.pattern.permute.xlu0 0
    %383 = vperm.xlu0 %382, %v353
    %v384 = vpop.permute.xlu0 %383
    %385 = vset.pattern.permute.xlu0 0
    %386 = vperm.xlu0 %385, %v355
    %v387 = vpop.permute.xlu0 %386
    %v388 = vlaneseq
    %v389 = vshrl.u32 %v388, 7
    %v390 = vsub.s32 %v239, %v389
    %v391 = vrot.slane %v366, %v390
    %v392 = vlaneseq
    %v393 = vshrl.u32 %v392, 7
    %v394 = vsub.s32 %v239, %v393
    %v395 = vrot.slane %v369, %v394
    %v396 = vlaneseq
    %v397 = vshrl.u32 %v396, 7
    %v398 = vsub.s32 %v239, %v397
    %v399 = vrot.slane %v372, %v398
    %v400 = vlaneseq
    %v401 = vshrl.u32 %v400, 7
    %v402 = vsub.s32 %v239, %v401
    %v403 = vrot.slane %v375, %v402
    %v404 = vlaneseq
    %v405 = vshrl.u32 %v404, 7
    %v406 = vsub.s32 %v239, %v405
    %v407 = vrot.slane %v378, %v406
    %v408 = vlaneseq
    %v409 = vshrl.u32 %v408, 7
    %v410 = vsub.s32 %v239, %v409
    %v411 = vrot.slane %v381, %v410
    %v412 = vlaneseq
    %v413 = vshrl.u32 %v412, 7
    %v414 = vsub.s32 %v239, %v413
    %v415 = vrot.slane %v384, %v414
    %v416 = vlaneseq
    %v417 = vshrl.u32 %v416, 7
    %v418 = vsub.s32 %v239, %v417
    %v419 = vrot.slane %v387, %v418
    %v420 = vsel %vm272, %v395, %v391
    %v421 = vsel %vm274, %v399, %v420
    %v422 = vsel %vm276, %v403, %v421
    %v423 = vsel %vm278, %v407, %v422
    %v424 = vsel %vm280, %v411, %v423
    %v425 = vsel %vm282, %v415, %v424
    %v426 = vsel %vm284, %v419, %v425
    %v428 = vsel %vm287, %v426, 0.0
    %429 = vadd.xlane.f32.xlu0 %v428
    %v430 = vpop.xlane.xlu0 %429
    %v432 = vlaneseq
    %v433 = vshrl.u32 %v432, 7
    %v434 = vsub.s32 0, %v433
    %v435 = vrot.slane %v430, %v434
    %v436 = vlaneseq
    %v437 = vshrl.u32 %v436, 7
    %v438 = vsub.s32 1, %v437
    %v439 = vrot.slane %v430, %v438
    %v440 = vlaneseq
    %v441 = vshrl.u32 %v440, 7
    %v442 = vsub.s32 2, %v441
    %v443 = vrot.slane %v430, %v442
    %v444 = vlaneseq
    %v445 = vshrl.u32 %v444, 7
    %v446 = vsub.s32 3, %v445
    %v447 = vrot.slane %v430, %v446
    %v448 = vlaneseq
    %v449 = vshrl.u32 %v448, 7
    %v450 = vsub.s32 4, %v449
    %v451 = vrot.slane %v430, %v450
    %v452 = vlaneseq
    %v453 = vshrl.u32 %v452, 7
    %v454 = vsub.s32 5, %v453
    %v455 = vrot.slane %v430, %v454
    %v456 = vlaneseq
    %v457 = vshrl.u32 %v456, 7
    %v458 = vsub.s32 6, %v457
    %v459 = vrot.slane %v430, %v458
    %v460 = vlaneseq
    %v461 = vshrl.u32 %v460, 7
    %v462 = vsub.s32 7, %v461
    %v463 = vrot.slane %v430, %v462
    %v472 = vrcp.pop %v435
    %v473 = vmul.f32 %v341, %v472
    %v474 = vrcp.pop %v439
    %v475 = vmul.f32 %v343, %v474
    %v476 = vrcp.pop %v443
    %v477 = vmul.f32 %v345, %v476
    %v478 = vrcp.pop %v447
    %v479 = vmul.f32 %v347, %v478
    %v480 = vrcp.pop %v451
    %v481 = vmul.f32 %v349, %v480
    %v482 = vrcp.pop %v455
    %v483 = vmul.f32 %v351, %v482
    %v484 = vrcp.pop %v459
    %v485 = vmul.f32 %v353, %v484
    %v486 = vrcp.pop %v463
    %v487 = vmul.f32 %v355, %v486
    %496 = vset.pattern.permute.xlu0 0
    %497 = vperm.xlu0 %496, %v473
    %v498 = vpop.permute.xlu0 %497
    %499 = vset.pattern.permute.xlu0 0
    %500 = vperm.xlu0 %499, %v475
    %v501 = vpop.permute.xlu0 %500
    %502 = vset.pattern.permute.xlu0 0
    %503 = vperm.xlu0 %502, %v477
    %v504 = vpop.permute.xlu0 %503
    %505 = vset.pattern.permute.xlu0 0
    %506 = vperm.xlu0 %505, %v479
    %v507 = vpop.permute.xlu0 %506
    %508 = vset.pattern.permute.xlu0 0
    %509 = vperm.xlu0 %508, %v481
    %v510 = vpop.permute.xlu0 %509
    %511 = vset.pattern.permute.xlu0 0
    %512 = vperm.xlu0 %511, %v483
    %v513 = vpop.permute.xlu0 %512
    %514 = vset.pattern.permute.xlu0 0
    %515 = vperm.xlu0 %514, %v485
    %v516 = vpop.permute.xlu0 %515
    %517 = vset.pattern.permute.xlu0 0
    %518 = vperm.xlu0 %517, %v487
    %v519 = vpop.permute.xlu0 %518
    %v520 = vlaneseq
    %v521 = vshrl.u32 %v520, 7
    %v522 = vsub.s32 %v239, %v521
    %v523 = vrot.slane %v498, %v522
    %v524 = vlaneseq
    %v525 = vshrl.u32 %v524, 7
    %v526 = vsub.s32 %v239, %v525
    %v527 = vrot.slane %v501, %v526
    %v528 = vlaneseq
    %v529 = vshrl.u32 %v528, 7
    %v530 = vsub.s32 %v239, %v529
    %v531 = vrot.slane %v504, %v530
    %v532 = vlaneseq
    %v533 = vshrl.u32 %v532, 7
    %v534 = vsub.s32 %v239, %v533
    %v535 = vrot.slane %v507, %v534
    %v536 = vlaneseq
    %v537 = vshrl.u32 %v536, 7
    %v538 = vsub.s32 %v239, %v537
    %v539 = vrot.slane %v510, %v538
    %v540 = vlaneseq
    %v541 = vshrl.u32 %v540, 7
    %v542 = vsub.s32 %v239, %v541
    %v543 = vrot.slane %v513, %v542
    %v544 = vlaneseq
    %v545 = vshrl.u32 %v544, 7
    %v546 = vsub.s32 %v239, %v545
    %v547 = vrot.slane %v516, %v546
    %v548 = vlaneseq
    %v549 = vshrl.u32 %v548, 7
    %v550 = vsub.s32 %v239, %v549
    %v551 = vrot.slane %v519, %v550
    %v552 = vsel %vm272, %v527, %v523
    %v553 = vsel %vm274, %v531, %v552
    %v554 = vsel %vm276, %v535, %v553
    %v555 = vsel %vm278, %v539, %v554
    %v556 = vsel %vm280, %v543, %v555
    %v557 = vsel %vm282, %v547, %v556
    %v558 = vsel %vm284, %v551, %v557
    %560 = vst.msk [vmem:[#allocation6] sm:$0xff] %vm287, %v558
    %v569 = vmul.f32 %v498, %v41
    %v570 = vmul.f32 %v501, %v42
    %v571 = vmul.f32 %v504, %v43
    %v572 = vmul.f32 %v507, %v44
    %v573 = vmul.f32 %v510, %v45
    %v574 = vmul.f32 %v513, %v46
    %v575 = vmul.f32 %v516, %v47
    %v576 = vmul.f32 %v519, %v48
    %v577 = vsel %vm53, %v569, 0.0
    %v578 = vrot.slane %v577, 4
    %v579 = vadd.f32 %v577, %v578
    %v580 = vrot.slane %v579, 2
    %v581 = vadd.f32 %v579, %v580
    %v582 = vrot.slane %v581, 1
    %v583 = vadd.f32 %v581, %v582
    %v584 = vsel %vm53, %v570, 0.0
    %v585 = vrot.slane %v584, 4
    %v586 = vadd.f32 %v584, %v585
    %v587 = vrot.slane %v586, 2
    %v588 = vadd.f32 %v586, %v587
    %v589 = vrot.slane %v588, 1
    %v590 = vadd.f32 %v588, %v589
    %v591 = vsel %vm53, %v571, 0.0
    %v592 = vrot.slane %v591, 4
    %v593 = vadd.f32 %v591, %v592
    %v594 = vrot.slane %v593, 2
    %v595 = vadd.f32 %v593, %v594
    %v596 = vrot.slane %v595, 1
    %v597 = vadd.f32 %v595, %v596
    %v598 = vsel %vm53, %v572, 0.0
    %v599 = vrot.slane %v598, 4
    %v600 = vadd.f32 %v598, %v599
    %v601 = vrot.slane %v600, 2
    %v602 = vadd.f32 %v600, %v601
    %v603 = vrot.slane %v602, 1
    %v604 = vadd.f32 %v602, %v603
    %v605 = vsel %vm53, %v573, 0.0
    %v606 = vrot.slane %v605, 4
    %v607 = vadd.f32 %v605, %v606
    %v608 = vrot.slane %v607, 2
    %v609 = vadd.f32 %v607, %v608
    %v610 = vrot.slane %v609, 1
    %v611 = vadd.f32 %v609, %v610
    %v612 = vsel %vm53, %v574, 0.0
    %v613 = vrot.slane %v612, 4
    %v614 = vadd.f32 %v612, %v613
    %v615 = vrot.slane %v614, 2
    %v616 = vadd.f32 %v614, %v615
    %v617 = vrot.slane %v616, 1
    %v618 = vadd.f32 %v616, %v617
    %v619 = vsel %vm53, %v575, 0.0
    %v620 = vrot.slane %v619, 4
    %v621 = vadd.f32 %v619, %v620
    %v622 = vrot.slane %v621, 2
    %v623 = vadd.f32 %v621, %v622
    %v624 = vrot.slane %v623, 1
    %v625 = vadd.f32 %v623, %v624
    %v626 = vsel %vm53, %v576, 0.0
    %v627 = vrot.slane %v626, 4
    %v628 = vadd.f32 %v626, %v627
    %v629 = vrot.slane %v628, 2
    %v630 = vadd.f32 %v628, %v629
    %v631 = vrot.slane %v630, 1
    %v632 = vadd.f32 %v630, %v631
    %v633 = vld [vmem:[%s0] sm:$0xff]
    %v642 = vsel %vm272, %v590, %v583
    %v643 = vsel %vm274, %v597, %v642
    %v644 = vsel %vm276, %v604, %v643
    %v645 = vsel %vm278, %v611, %v644
    %v646 = vsel %vm280, %v618, %v645
    %v647 = vsel %vm282, %v625, %v646
    %v648 = vsel %vm284, %v632, %v647
    %651 = vrot.lane.b32.xlu0 %v633, 32
    %v652 = vpop.permute.xlu0 %651
    %v654 = vsel %vm53, %v648, %v652
    %v655 = vld [vmem:[%s4] sm:$0xff]
    %v656 = vld [vmem:[%s4 + $0x8] sm:$0xff]
    %v657 = vld [vmem:[%s4 + $0x10] sm:$0xff]
    %v658 = vld [vmem:[%s4 + $0x18] sm:$0xff]
    %v659 = vld [vmem:[%s4 + $0x20] sm:$0xff]
    %v660 = vld [vmem:[%s4 + $0x28] sm:$0xff]
    %v661 = vld [vmem:[%s4 + $0x30] sm:$0xff]
    %v662 = vld [vmem:[%s4 + $0x38] sm:$0xff]
    %v663 = vld [vmem:[%s5] sm:$0x1]
    %v665 = vlaneseq
    %v666 = vshrl.u32 %v665, 7
    %v667 = vsub.s32 0, %v666
    %v668 = vrot.slane %v663, %v667
    %vm670 = vcmask 523264
    %v672 = vsel %vm670, %v654, 0
    %674 = vmatprep.subr.mxu0 0.0
    %675 = vmatpush1.msra.mxu0 %v655
    %676 = vmatprep.subr.mxu0 0.0
    %677 = vmatpush1.msra.mxu0 %v656
    %678 = vmatprep.subr.mxu0 0.0
    %679 = vmatpush1.msra.mxu0 %v657
    %680 = vmatprep.subr.mxu0 0.0
    %681 = vmatpush1.msra.mxu0 %v658
    %682 = vmatprep.subr.mxu0 0.0
    %683 = vmatpush1.msra.mxu0 %v659
    %684 = vmatprep.subr.mxu0 0.0
    %685 = vmatpush1.msra.mxu0 %v660
    %686 = vmatprep.subr.mxu0 0.0
    %687 = vmatpush1.msra.mxu0 %v661
    %688 = vmatprep.subr.mxu0 0.0
    %689 = vmatpush1.msra.mxu0 %v662
    %690 = vmatprep.subr.mxu0 0.0
    %691 = vmatpush1.msra.mxu0 0.0
    %692 = vmatprep.subr.mxu0 0.0
    %693 = vmatpush1.msra.mxu0 0.0
    %694 = vmatprep.subr.mxu0 0.0
    %695 = vmatpush1.msra.mxu0 0.0
    %696 = vmatprep.subr.mxu0 0.0
    %697 = vmatpush1.msra.mxu0 0.0
    %698 = vmatprep.subr.mxu0 0.0
    %699 = vmatpush1.msra.mxu0 0.0
    %700 = vmatprep.subr.mxu0 0.0
    %701 = vmatpush1.msra.mxu0 0.0
    %702 = vmatprep.subr.mxu0 0.0
    %703 = vmatpush1.msra.mxu0 0.0
    %704 = vmatprep.subr.mxu0 0.0
    %705 = vmatpush1.msra.mxu0 0.0
    %706 = vmatprep.subr.mxu0 0.0
    %707 = vmatpush1.msra.mxu0 0.0
    %708 = vmatprep.subr.mxu0 0.0
    %709 = vmatpush1.msra.mxu0 0.0
    %710 = vmatprep.subr.mxu0 0.0
    %711 = vmatpush1.msra.mxu0 0.0
    %712 = vmatprep.subr.mxu0 0.0
    %713 = vmatpush1.msra.mxu0 0.0
    %714 = vmatprep.subr.mxu0 0.0
    %715 = vmatpush1.msra.mxu0 0.0
    %716 = vmatprep.subr.mxu0 0.0
    %717 = vmatpush1.msra.mxu0 0.0
    %718 = vmatprep.subr.mxu0 0.0
    %719 = vmatpush1.msra.mxu0 0.0
    %720 = vmatprep.subr.mxu0 0.0
    %721 = vmatpush1.msra.mxu0 0.0
    %722 = vmatprep.subr.mxu0 0.0
    %723 = vmatpush1.msra.mxu0 0.0
    %724 = vmatprep.subr.mxu0 0.0
    %725 = vmatpush1.msra.mxu0 0.0
    %726 = vmatprep.subr.mxu0 0.0
    %727 = vmatpush1.msra.mxu0 0.0
    %728 = vmatprep.subr.mxu0 0.0
    %729 = vmatpush1.msra.mxu0 0.0
    %730 = vmatprep.subr.mxu0 0.0
    %731 = vmatpush1.msra.mxu0 0.0
    %732 = vmatprep.subr.mxu0 0.0
    %733 = vmatpush1.msra.mxu0 0.0
    %734 = vmatprep.subr.mxu0 0.0
    %735 = vmatpush1.msra.mxu0 0.0
    %736 = vmatprep.subr.mxu0 0.0
    %737 = vmatpush1.msra.mxu0 0.0
    %738 = vmatprep.mubr.f32.mxu0 0.0
    %739 = vmatmul.mubr.f32.gmra.mrb[0].mxu0 %v672
    %v740 = vpop.f32.mrb[0].mxu0
    %v741 = vadd.f32 %v668, %v740
    %v742 = vpop.f32.mrb[0].mxu0
    %743 = vdwg.mxu0
    %vm744 = vcmask 130048
    %745 = vst.msk [vmem:[#allocation5] sm:$0xff] %vm744, %v741
    // Predicated region
    $region30: #{tpu_custom_call.1} parent=1 // pred_check
      _
    $region31: #{tpu_custom_call.1} parent=1 // pred_check_branch
      %747 = sbr.rel (0) target = $region33
    $region32: #{tpu_custom_call.1} parent=1 // pred_region
      %s749 = ssub.s32 128, 128
      %750 = vsyncadd [#allocation4], %s749
      %s752 = sshll.u32 [#allocation5], 4
      %s753 = int_to_ptr.vmem [resolvable:$true] %s752
      %755 = dma.vmem_to_hbm [thread:$0]  %s753, 128, %s6, [#allocation4]
    $region33: #{tpu_custom_call.1} parent=1 // pred_fallthru
      _
    // Predicated region
    $region34: #{tpu_custom_call.1} parent=1 // pred_check
      _
    $region35: #{tpu_custom_call.1} parent=1 // pred_check_branch
      %757 = sbr.rel (0) target = $region37
    $region36: #{tpu_custom_call.1} parent=1 // pred_region
      %s759 = ssub.s32 128, 128
      %760 = vsyncadd [#allocation7], %s759
      %s762 = sshll.u32 [#allocation6], 4
      %s763 = int_to_ptr.vmem [resolvable:$true] %s762
      %765 = dma.vmem_to_hbm [thread:$0]  %s763, 128, %s7, [#allocation7]
    $region37: #{tpu_custom_call.1} parent=1 // pred_fallthru
      _
    // Predicated region
    $region38: #{tpu_custom_call.1} parent=1 // pred_check
      _
    $region39: #{tpu_custom_call.1} parent=1 // pred_check_branch
      %767 = sbr.rel (0) target = $region41
    $region40: #{tpu_custom_call.1} parent=1 // pred_region
      %768 = dma.done [#allocation4], 128
    $region41: #{tpu_custom_call.1} parent=1 // pred_fallthru
      _
    // Predicated region
    $region42: #{tpu_custom_call.1} parent=1 // pred_check
      _
    $region43: #{tpu_custom_call.1} parent=1 // pred_check_branch
      %770 = sbr.rel (0) target = $region45
    $region44: #{tpu_custom_call.1} parent=1 // pred_region
      %771 = dma.done [#allocation7], 128
    $region45: #{tpu_custom_call.1} parent=1 // pred_fallthru
      _
    %772 = vsyncpa [#allocation3], 1
    %773 = vsyncpa [#allocation4], 1
    %774 = vsyncpa [#allocation7], 1

</llo_original>
